<compile_context>
chip_gen: v5e
topology: v5e:2x2
jax: 0.10.0
libtpu: 0.0.40
codegen_flags: <defaults>
</compile_context>

<pallas_src>
import functools

import jax
import jax.numpy as jnp
from jax.experimental import pallas as pl
from jax.experimental.pallas import tpu as pltpu


def _pointwise_conv_kernel(x_ref, w_ref, b_ref, o_ref):
    # x_ref: (C_in, TL), w_ref: (TCO, C_in), b_ref: (TCO, 1), o_ref: (TCO, TL)
    acc = jnp.dot(w_ref[...], x_ref[...], preferred_element_type=jnp.float32)
    acc = acc + b_ref[...].astype(jnp.float32)          # broadcast along lane axis
    o_ref[...] = acc.astype(o_ref.dtype)


def _vmem_limit_bytes() -> int:
    """~3/4 of physical VMEM: ~96 MiB on v5e/v6e (128 MiB), ~48 MiB on v7x (64 MiB)."""
    cap = 64 * 1024 * 1024  # conservative fallback = smallest physical VMEM (v7x)
    try:
        info = pltpu.get_tpu_info()
        cap = int(getattr(info, "vmem_capacity_bytes", cap)) or cap
    except Exception:
        pass
    return (3 * cap) // 4


def _choose_tiles(l_out: int, c_in: int, c_out: int, itemsize: int,
                  vmem_limit: int, force_tco=None, force_tl=None):
    """Pick (C_out tile, L tile) so double-buffered tiles fit the VMEM budget."""
    budget = vmem_limit - (4 << 20)  # margin for Mosaic internal scratch / sems

    # C_out tile: keep the worst-case double-buffered weight under ~half the budget
    # so the activation L tile stays large (>= 512 lanes) even for huge weights.
    if force_tco is not None:
        tco = max(8, min(int(force_tco), c_out))
    else:
        tco = c_out
        while tco > 256 and 2 * tco * c_in * itemsize > budget // 2:
            tco = max(256, ((tco // 2) + 127) // 128 * 128)

    # L tile: largest lane-dense tile fitting what's left (x + out double-buffered).
    if force_tl is not None:
        tl = int(force_tl)
    else:
        rem = budget - 2 * tco * (c_in + 1) * itemsize
        per_col = 2 * (c_in + tco) * itemsize
        tl = min(2048, max(128, rem // max(per_col, 1)))
    if tl >= l_out:
        tl = l_out            # full array dim is always a legal block shape
    else:
        tl = max(128, (tl // 128) * 128)
    return tco, tl


@functools.partial(
    jax.jit,
    static_argnames=("stride", "padding", "_force_c_out_tile", "_force_l_tile"))
def pointwise_conv1d(x, weight, bias, stride: int = 1, padding: int = 0,
                     _force_c_out_tile=None, _force_l_tile=None):
    """1x1 Conv1d matching PyTorch nn.Conv1d(in, out, kernel_size=1, stride, padding).

    x:      (N, C_in, L)   -- PyTorch NCL layout
    weight: (C_out, C_in)  -- Conv1d weight with the kernel-size dim squeezed
    bias:   (C_out,)
    returns (N, C_out, L_out),  L_out = (L + 2*padding - 1)//stride + 1
    """
    n, c_in, _ = x.shape
    c_out = weight.shape[0]

    # Unify MXU operand dtypes (mixed bf16/f32 would promote onto a slower path);
    # bias stays f32 since it is added in f32 inside the kernel anyway.
    weight = weight.astype(x.dtype)
    b2d = bias.astype(jnp.float32).reshape(c_out, 1)

    # Glue: padding / stride on the length axis (kernel_size=1 => pure subsample).
    # TODO(synk): fold stride/padding into the x BlockSpec (strided in-kernel read +
    # pl.when bias-only edge columns) to remove this extra HBM pass when stride>1 or
    # padding>0; the common conformer case (stride=1, padding=0) never enters here.
    if padding > 0:
        x = jnp.pad(x, ((0, 0), (0, 0), (padding, padding)))
    if stride > 1:
        x = x[:, :, ::stride]
    l_out = x.shape[2]

    itemsize = jnp.dtype(x.dtype).itemsize
    vmem_limit = _vmem_limit_bytes()
    tco, tl = _choose_tiles(l_out, c_in, c_out, itemsize, vmem_limit,
                            force_tco=_force_c_out_tile, force_tl=_force_l_tile)
    num_l = pl.cdiv(l_out, tl)
    num_co = pl.cdiv(c_out, tco)

    if num_co == 1:
        # Default path: 2-D grid, L-tile axis first (v7x megacore splits the big axis).
        grid = (num_l, n)
        in_specs = [
            # x: one batch row, all input channels, TL time steps (lane axis).
            pl.BlockSpec((pl.Squeezed(), c_in, tl), lambda l, b: (b, 0, l)),
            # weight / bias: constant block index -> fetched once, VMEM-resident.
            pl.BlockSpec((c_out, c_in), lambda l, b: (0, 0)),
            pl.BlockSpec((c_out, 1), lambda l, b: (0, 0)),
        ]
        out_specs = pl.BlockSpec((pl.Squeezed(), c_out, tl), lambda l, b: (b, 0, l))
        dims = ("parallel", "parallel")
    else:
        # Large-weight fallback: C_out-tile axis outermost so each weight tile is
        # DMA'd exactly once; x is re-read num_co times (weight is the VMEM hog).
        grid = (num_co, num_l, n)
        in_specs = [
            pl.BlockSpec((pl.Squeezed(), c_in, tl), lambda co, l, b: (b, 0, l)),
            pl.BlockSpec((tco, c_in), lambda co, l, b: (co, 0)),
            pl.BlockSpec((tco, 1), lambda co, l, b: (co, 0)),
        ]
        out_specs = pl.BlockSpec((pl.Squeezed(), tco, tl),
                                 lambda co, l, b: (b, co, l))
        dims = ("parallel", "parallel", "parallel")

    cost = pl.CostEstimate(
        flops=2 * n * l_out * c_in * c_out,
        transcendentals=0,
        bytes_accessed=(num_co * n * c_in * l_out + c_in * c_out + c_out
                        + n * c_out * l_out) * itemsize,
    )

    out = pl.pallas_call(
        _pointwise_conv_kernel,
        out_shape=jax.ShapeDtypeStruct((n, c_out, l_out), x.dtype),
        grid_spec=pltpu.PrefetchScalarGridSpec(
            num_scalar_prefetch=0,
            grid=grid,
            in_specs=in_specs,
            out_specs=out_specs,
        ),
        compiler_params=pltpu.CompilerParams(
            dimension_semantics=dims,
            vmem_limit_bytes=vmem_limit),
        cost_estimate=cost,
    )(x, weight, b2d)

    return out


if __name__ == "__main__":
    # Small deterministic example: batch=2, in_channels=8, out_channels=16, seq=16
    key = jax.random.PRNGKey(0)
    k_x, k_w, k_b = jax.random.split(key, 3)

    N, C_IN, C_OUT, L = 2, 8, 16, 16
    x = jax.random.normal(k_x, (N, C_IN, L), dtype=jnp.float32)
    # nn.Conv1d(in, out, kernel_size=1) params: weight (out, in, 1) -> (out, in), bias (out,)
    weight = jax.random.normal(k_w, (C_OUT, C_IN), dtype=jnp.float32) * 0.1
    bias = jax.random.normal(k_b, (C_OUT,), dtype=jnp.float32) * 0.1

    ref = jnp.einsum("ncl,oc->nol", x, weight) + bias[None, :, None]

    # Case 1: stride=1, padding=0 (default conformer path, 2-D grid).
    out = pointwise_conv1d(x, weight, bias, stride=1, padding=0)
    jax.block_until_ready(out)
    assert out.shape == (N, C_OUT, L), out.shape
    assert jnp.allclose(out, ref, atol=1e-5, rtol=1e-5), "mismatch vs reference (s=1,p=0)"

    # Case 2: stride=2, padding=1 (exercises the padding/stride glue path).
    out2 = pointwise_conv1d(x, weight, bias, stride=2, padding=1)
    jax.block_until_ready(out2)
    x_pad = jnp.pad(x, ((0, 0), (0, 0), (1, 1)))[:, :, ::2]
    ref2 = jnp.einsum("ncl,oc->nol", x_pad, weight) + bias[None, :, None]
    l_out2 = (L + 2 * 1 - 1) // 2 + 1
    assert out2.shape == (N, C_OUT, l_out2), out2.shape
    assert jnp.allclose(out2, ref2, atol=1e-5, rtol=1e-5), "mismatch vs reference (s=2,p=1)"

    # Case 3: force the C_out-tiled (3-D grid) large-weight fallback at small shapes.
    out3 = pointwise_conv1d(x, weight, bias, _force_c_out_tile=8)
    jax.block_until_ready(out3)
    assert out3.shape == (N, C_OUT, L), out3.shape
    assert jnp.allclose(out3, ref, atol=1e-5, rtol=1e-5), "mismatch vs reference (C_out-tiled)"

    # Case 4: multiple L tiles with a ragged (implicitly masked) last tile.
    L2 = 160
    x4 = jax.random.normal(k_x, (N, C_IN, L2), dtype=jnp.float32)
    ref4 = jnp.einsum("ncl,oc->nol", x4, weight) + bias[None, :, None]
    out4 = pointwise_conv1d(x4, weight, bias, _force_l_tile=128)
    jax.block_until_ready(out4)
    assert out4.shape == (N, C_OUT, L2), out4.shape
    assert jnp.allclose(out4, ref4, atol=1e-5, rtol=1e-5), "mismatch vs reference (multi L tile)"

    print("KERNEL_OK")
</pallas_src>

<mosaic_0001>
module attributes {stable_mosaic.version = 11 : i64} {
  func.func @_pointwise_conv_kernel(%arg0: i32, %arg1: i32, %arg2: memref<1x8x16xf32, #tpu.memory_space<vmem>>, %arg3: memref<16x8xf32, #tpu.memory_space<vmem>>, %arg4: memref<16x1xf32, #tpu.memory_space<vmem>>, %arg5: memref<1x16x16xf32, #tpu.memory_space<vmem>>) attributes {dimension_semantics = [#tpu.dimension_semantics<parallel>, #tpu.dimension_semantics<parallel>], iteration_bounds = array<i64: 1, 2>, scalar_prefetch = 0 : i64, scratch_operands = 0 : i64, tpu.core_type = #tpu.core_type<tc>, window_params = [{transform_indices = @transform_0, window_bounds = array<i64: 1, 8, 16>}, {pipeline_mode = #tpu.pipeline_mode<synchronous>, transform_indices = @transform_1, window_bounds = array<i64: 16, 8>}, {pipeline_mode = #tpu.pipeline_mode<synchronous>, transform_indices = @transform_2, window_bounds = array<i64: 16, 1>}, {transform_indices = @transform_3, window_bounds = array<i64: 1, 16, 16>}]} {
    %c0 = arith.constant 0 : index
    %c0_0 = arith.constant 0 : index
    %0 = vector.load %arg3[%c0, %c0_0] : memref<16x8xf32, #tpu.memory_space<vmem>>, vector<16x8xf32>
    %c0_1 = arith.constant 0 : index
    %c0_2 = arith.constant 0 : index
    %c0_3 = arith.constant 0 : index
    %1 = vector.load %arg2[%c0_1, %c0_2, %c0_3] : memref<1x8x16xf32, #tpu.memory_space<vmem>>, vector<1x8x16xf32>
    %2 = vector.shape_cast %1 : vector<1x8x16xf32> to vector<8x16xf32>
    %cst = arith.constant dense<0.000000e+00> : vector<16x16xf32>
    %3 = tpu.matmul %0, %2, %cst {dimension_numbers = #tpu.dot_dimension_numbers<[1], [0], [0], [1], [0, 0, 1, 1], [], []>} : vector<16x8xf32>, vector<8x16xf32>, vector<16x16xf32> -> vector<16x16xf32>
    %c0_4 = arith.constant 0 : index
    %c0_5 = arith.constant 0 : index
    %4 = vector.load %arg4[%c0_4, %c0_5] : memref<16x1xf32, #tpu.memory_space<vmem>>, vector<16x1xf32>
    %5 = vector.broadcast %4 : vector<16x1xf32> to vector<16x16xf32>
    %6 = arith.addf %3, %5 : vector<16x16xf32>
    %c0_6 = arith.constant 0 : index
    %c0_7 = arith.constant 0 : index
    %c0_8 = arith.constant 0 : index
    %7 = vector.load %arg5[%c0_6, %c0_7, %c0_8] : memref<1x16x16xf32, #tpu.memory_space<vmem>>, vector<1x16x16xf32>
    %8 = vector.shape_cast %7 : vector<1x16x16xf32> to vector<16x16xf32>
    %9 = vector.shape_cast %6 : vector<16x16xf32> to vector<1x16x16xf32>
    tpu.vector_store %arg5[%c0_6, %c0_7, %c0_8], %9 {strides = array<i32>} : memref<1x16x16xf32, #tpu.memory_space<vmem>>, vector<1x16x16xf32>,
    return
  }
  func.func @transform_0(%arg0: i32, %arg1: i32) -> (i32, i32, i32) {
    %c0_i32 = arith.constant 0 : i32
    %c0_i32_0 = arith.constant 0 : i32
    return %arg1, %c0_i32, %arg0 : i32, i32, i32
  }
  func.func @transform_1(%arg0: i32, %arg1: i32) -> (i32, i32) {
    %c0_i32 = arith.constant 0 : i32
    %c0_i32_0 = arith.constant 0 : i32
    %c0_i32_1 = arith.constant 0 : i32
    return %c0_i32, %c0_i32_0 : i32, i32
  }
  func.func @transform_2(%arg0: i32, %arg1: i32) -> (i32, i32) {
    %c0_i32 = arith.constant 0 : i32
    %c0_i32_0 = arith.constant 0 : i32
    %c0_i32_1 = arith.constant 0 : i32
    return %c0_i32, %c0_i32_0 : i32, i32
  }
  func.func @transform_3(%arg0: i32, %arg1: i32) -> (i32, i32, i32) {
    %c0_i32 = arith.constant 0 : i32
    %c0_i32_0 = arith.constant 0 : i32
    return %arg1, %c0_i32, %arg0 : i32, i32, i32
  }
}

</mosaic_0001>

<llo_original>
// kernel: pointwise_conv1d.1
$region0: #{pointwise_conv1d.1}
  #allocation0 [shape = 'u32[]', space=smem, size = 0x4, offset = 0x4, fixed_abs, tag = 'smem constant byte address 0x4 - core index']
  #allocation1 [shape = 'u32[72,128]{1,0:T(1,128)}', space=vmem, size = 0x9000, scoped, tag = 'internal scratch']
  %s0 = inlined_call_operand.vmem [shape: f32[2,8,16], index: 0, kind: input, shape index: {}]
  %s1 = inlined_call_operand.vmem [shape: f32[16,8], index: 1, kind: input, shape index: {}]
  %s2 = inlined_call_operand.vmem [shape: f32[16,1], index: 2, kind: input, shape index: {}]
  %s3 = inlined_call_operand.hbm [shape: f32[2,16,16], index: 3, kind: output, shape index: {}]
  %s4 = sld [smem:[#allocation0]]
  $region45: #{pointwise_conv1d.1} parent=0
    _
  %s6 = ssub.s32 1, %s4
  %s7 = scalar_select 0, %s6, %s4
  $region1: #{pointwise_conv1d.1} parent=0
    #allocation2 [shape = 'u8[16384]{0}', space=vmem, size = 0x4000, scoped, tag = 'output window, operand 0']
    #allocation3 [shape = 's32[2]{0}', space=sflag, size = 0x8, scoped, tag = 'scoped memory for pointwise_conv1d.1']
    %8 = vsyncpa [#allocation3], 0
    %s9 = scalar_lea.sflag [#allocation3], 1
    %10 = vsyncpa %s9, 0
    loop: start=0, step=1, limit=4
    $region2: #{pointwise_conv1d.1} parent=1 // loop_pre_header
      _
    $region3: #{pointwise_conv1d.1} parent=1 // loop_header
      %s12 = sphi 0, %s16
      %p13 = scmp.ge.s32.totalorder %s12, 4
      %s19 = sphi 0, %s31
      %s20 = sphi 0, %s27
      %s21 = sphi 0, %s19
      %s22 = sphi 0, %s20
      %s23 = sphi 0, %s21
      %s24 = sphi 0, %s22
      %s36 = sphi 0, %s38
      %s39 = sphi 0, %s36
      %s40 = sphi 0, %s39
      %s56 = sphi 0, %s40
      %s60 = sphi 0, %s60
      %s62 = sphi 0, %s60
      %s63 = sphi 0, %s62
      %s77 = sphi 0, %s63
      %s81 = sphi 0, %s81
      %s83 = sphi 0, %s81
      %s84 = sphi 0, %s83
      %s98 = sphi 0, %s84
      %s106 = sphi 0, %s108
      %s109 = sphi 0, %s106
      %s110 = sphi 0, %s109
      %s126 = sphi 0, %s110
    $region4: #{pointwise_conv1d.1} parent=1 // loop_header_branch
      %15 = sbr.rel (%p13) target = $region8
    $region5: #{pointwise_conv1d.1} parent=1 // loop_body
      %s17 = ssub.s32 %s12, 1
      %s18 = ssub.s32 %s12, 2
      %s25 = sadd.s32 1, %s20
      %p26 = scmp.ge.s32.totalorder %s25, 2
      %s27 = scalar_select %p26, 0, %s25
      %s28 = sadd.s32 1, %s19
      %s29 = scalar_select %p26, %s28, %s19
      %p30 = scmp.ge.s32.totalorder %s29, 1
      %s31 = scalar_select %p30, 0, %s29
      %s32 = ssub.s32 %s20, %s27
      %s33 = ssub.s32 %s19, %s31
      %s34 = sor.u32 %s32, %s33
      %p35 = scmp.eq.s32.totalorder %s34, 0
      %s37 = sadd.s32 %s36, 1
      %s38 = scalar_select %p35, %s36, %s37
      %p41 = pneg %p35
      %p42 = scmp.eq.s32.totalorder %s12, 1
      %p43 = por %p41, %p42
      %p44 = scmp.ne.s32.totalorder %s36, %s39
      %p45 = scmp.eq.s32.totalorder %s12, 0
      %p46 = por %p44, %p45
      %p47 = scmp.ne.s32.totalorder %s36, %s39
      %p48 = scmp.eq.s32.totalorder %s17, 1
      %p49 = por %p47, %p48
      %p50 = scmp.ne.s32.totalorder %s39, %s40
      %p51 = scmp.eq.s32.totalorder %s17, 0
      %p52 = por %p50, %p51
      %p53 = scmp.ne.s32.totalorder %s39, %s40
      %p54 = scmp.eq.s32.totalorder %s18, 1
      %p55 = por %p53, %p54
      %p57 = scmp.ne.s32.totalorder %s40, %s56
      %p58 = scmp.eq.s32.totalorder %s18, 0
      %p59 = por %p57, %p58
      %s61 = sadd.s32 %s60, 1
      %p64 = scmp.eq.s32.totalorder %s12, 1
      %p65 = scmp.ne.s32.totalorder %s60, %s62
      %p66 = scmp.eq.s32.totalorder %s12, 0
      %p67 = por %p65, %p66
      %p68 = scmp.ne.s32.totalorder %s60, %s62
      %p69 = scmp.eq.s32.totalorder %s17, 1
      %p70 = por %p68, %p69
      %p71 = scmp.ne.s32.totalorder %s62, %s63
      %p72 = scmp.eq.s32.totalorder %s17, 0
      %p73 = por %p71, %p72
      %p74 = scmp.ne.s32.totalorder %s62, %s63
      %p75 = scmp.eq.s32.totalorder %s18, 1
      %p76 = por %p74, %p75
      %p78 = scmp.ne.s32.totalorder %s63, %s77
      %p79 = scmp.eq.s32.totalorder %s18, 0
      %p80 = por %p78, %p79
      %s82 = sadd.s32 %s81, 1
      %p85 = scmp.eq.s32.totalorder %s12, 1
      %p86 = scmp.ne.s32.totalorder %s81, %s83
      %p87 = scmp.eq.s32.totalorder %s12, 0
      %p88 = por %p86, %p87
      %p89 = scmp.ne.s32.totalorder %s81, %s83
      %p90 = scmp.eq.s32.totalorder %s17, 1
      %p91 = por %p89, %p90
      %p92 = scmp.ne.s32.totalorder %s83, %s84
      %p93 = scmp.eq.s32.totalorder %s17, 0
      %p94 = por %p92, %p93
      %p95 = scmp.ne.s32.totalorder %s83, %s84
      %p96 = scmp.eq.s32.totalorder %s18, 1
      %p97 = por %p95, %p96
      %p99 = scmp.ne.s32.totalorder %s84, %s98
      %p100 = scmp.eq.s32.totalorder %s18, 0
      %p101 = por %p99, %p100
      %s102 = ssub.s32 %s20, %s27
      %s103 = ssub.s32 %s19, %s31
      %s104 = sor.u32 %s102, %s103
      %p105 = scmp.eq.s32.totalorder %s104, 0
      %s107 = sadd.s32 %s106, 1
      %s108 = scalar_select %p105, %s106, %s107
      %p111 = pneg %p105
      %p112 = scmp.eq.s32.totalorder %s12, 1
      %p113 = por %p111, %p112
      %p114 = scmp.ne.s32.totalorder %s106, %s109
      %p115 = scmp.eq.s32.totalorder %s12, 0
      %p116 = por %p114, %p115
      %p117 = scmp.ne.s32.totalorder %s106, %s109
      %p118 = scmp.eq.s32.totalorder %s17, 1
      %p119 = por %p117, %p118
      %p120 = scmp.ne.s32.totalorder %s109, %s110
      %p121 = scmp.eq.s32.totalorder %s17, 0
      %p122 = por %p120, %p121
      %p123 = scmp.ne.s32.totalorder %s109, %s110
      %p124 = scmp.eq.s32.totalorder %s18, 1
      %p125 = por %p123, %p124
      %p127 = scmp.ne.s32.totalorder %s110, %s126
      %p128 = scmp.eq.s32.totalorder %s18, 0
      %p129 = por %p127, %p128
      %p130 = scmp.le.s32.totalorder 1, %s12
      %p131 = scmp.lt.s32.totalorder %s12, 3
      %p132 = pnand %p130, %p131
      %p133 = pneg %p132
      // Predicated region
      $region9: #{pointwise_conv1d.1} parent=5 // pred_check
        _
      $region10: #{pointwise_conv1d.1} parent=5 // pred_check_branch
        %135 = sbr.rel (%p132) target = $region12
      $region11: #{pointwise_conv1d.1} parent=5 // pred_region
        %s136 = ssub.s32 %s12, 1
        // Predicated region
        $region13: #{pointwise_conv1d.1} parent=11 // pred_check
          %p137 = pneg %p73
        $region14: #{pointwise_conv1d.1} parent=11 // pred_check_branch
          %139 = sbr.rel (%p137) target = $region16
        $region15: #{pointwise_conv1d.1} parent=11 // pred_region
          _
        $region16: #{pointwise_conv1d.1} parent=11 // pred_fallthru
          _
        // Predicated region
        $region17: #{pointwise_conv1d.1} parent=11 // pred_check
          %p140 = pneg %p94
        $region18: #{pointwise_conv1d.1} parent=11 // pred_check_branch
          %142 = sbr.rel (%p140) target = $region20
        $region19: #{pointwise_conv1d.1} parent=11 // pred_region
          _
        $region20: #{pointwise_conv1d.1} parent=11 // pred_fallthru
          _
      $region12: #{pointwise_conv1d.1} parent=5 // pred_fallthru
        _
      %p143 = scmp.lt.s32.totalorder %s12, 2
      // Predicated region
      $region21: #{pointwise_conv1d.1} parent=5 // pred_check
        %p144 = pneg %p143
      $region22: #{pointwise_conv1d.1} parent=5 // pred_check_branch
        %146 = sbr.rel (%p144) target = $region24
      $region23: #{pointwise_conv1d.1} parent=5 // pred_region
        // Predicated region
        $region25: #{pointwise_conv1d.1} parent=23 // pred_check
          %p147 = pneg %p46
        $region26: #{pointwise_conv1d.1} parent=23 // pred_check_branch
          %149 = sbr.rel (%p147) target = $region28
        $region27: #{pointwise_conv1d.1} parent=23 // pred_region
          %p150 = scmp.lt.s32.totalorder %s20, 1
          %s151 = scalar_select %p150, %s20, 1
          %p152 = scmp.lt.s32.totalorder %s19, 0
          %s153 = scalar_select %p152, %s19, 0
          %s154 = sadd.s32 %s153, %s151
          %s155 = smul.addr %s154, 8
          %s156 = scalar_lea.vmem %s0, %s155
        $region28: #{pointwise_conv1d.1} parent=23 // pred_fallthru
          _
      $region24: #{pointwise_conv1d.1} parent=5 // pred_fallthru
        _
      %p157 = scmp.le.s32.totalorder 1, %s12
      %p158 = scmp.lt.s32.totalorder %s12, 3
      %p159 = pnand %p157, %p158
      %p160 = pneg %p159
      // Predicated region
      $region29: #{pointwise_conv1d.1} parent=5 // pred_check
        _
      $region30: #{pointwise_conv1d.1} parent=5 // pred_check_branch
        %162 = sbr.rel (%p159) target = $region32
      $region31: #{pointwise_conv1d.1} parent=5 // pred_region
        %s163 = ssub.s32 %s12, 1
        %p164 = scmp.lt.s32.totalorder %s22, 1
        %s165 = scalar_select %p164, %s22, 1
        %p166 = scmp.lt.s32.totalorder %s21, 0
        %s167 = scalar_select %p166, %s21, 0
        %s168 = sadd.s32 %s167, %s165
        %s169 = smul.addr %s168, 8
        %s170 = scalar_lea.vmem %s0, %s169
        %p171 = pneg %p52
        %p172 = pneg %p49
        %p173 = pneg %p73
        %p174 = pneg %p70
        %p175 = pneg %p94
        %p176 = pneg %p91
        %p177 = pneg %p122
        %p178 = pneg %p119
        %s179 = sand.u32 %s109, 1
        %s180 = scalar_lea.sflag [#allocation3], %s179
        %s181 = sand.u32 %s109, 1
        %s182 = smul.addr %s181, 16
        %s183 = scalar_lea.vmem [#allocation2], %s182
        %p184 = scmp.lt.s32.totalorder %s22, 1
        %s185 = scalar_select %p184, %s22, 1
        %p186 = scmp.lt.s32.totalorder %s21, 0
        %s187 = scalar_select %p186, %s21, 0
        %s188 = sadd.s32 %s187, %s185
        %s189 = smul.addr %s188, 8
        %s190 = scalar_lea.vmem %s0, %s189
        %v191 = vld [vmem:[%s1] sm:$0xff]
        %v192 = vld [vmem:[%s1 + $0x8] sm:$0xff]
        %v193 = vld [vmem:[%s190] sm:$0xff]
        %v194 = vld [vmem:[%s2] sm:$0xff]
        %v195 = vld [vmem:[%s2 + $0x8] sm:$0xff]
        %197 = vset.pattern.permute.xlu0 0
        %198 = vperm.xlu0 %197, %v194
        %v199 = vpop.permute.xlu0 %198
        %202 = vset.pattern.permute.xlu0 0
        %203 = vperm.xlu0 %202, %v195
        %v204 = vpop.permute.xlu0 %203
        %vm206 = vcmask 64512
        %v208 = vsel %vm206, %v191, 0
        %v211 = vsel %vm206, %v192, 0
        %213 = vmatpush.msra.mxu0 0.0
        %214 = vmatpush.msra.mxu0 0.0
        %215 = vmatpush.msra.mxu0 0.0
        %216 = vmatpush.msra.mxu0 0.0
        %217 = vmatpush.msra.mxu0 0.0
        %218 = vmatpush.msra.mxu0 0.0
        %219 = vmatpush.msra.mxu0 0.0
        %220 = vmatpush.msra.mxu0 0.0
        %221 = vmatpush.msra.mxu0 0.0
        %222 = vmatpush.msra.mxu0 0.0
        %223 = vmatpush.msra.mxu0 0.0
        %224 = vmatpush.msra.mxu0 0.0
        %225 = vmatpush.msra.mxu0 0.0
        %226 = vmatpush.msra.mxu0 0.0
        %227 = vmatpush.msra.mxu0 0.0
        %228 = vmatpush.msra.mxu0 %v193
        %229 = vmatmul.f32.gmra.mxu0 %v208
        %v230 = vpop.f32.mrf.mxu0
        %v231 = vadd.f32 %v199, %v230
        %232 = vmatmul.f32.gmra.mxu0 %v211
        %v233 = vpop.f32.mrf.mxu0
        %v234 = vadd.f32 %v204, %v233
        %235 = vdwg.mxu0
        %vm236 = vcmask 130048
        %237 = vst.msk [vmem:[%s183] sm:$0xff] %vm236, %v231
        %238 = vst.msk [vmem:[%s183 + $0x8] sm:$0xff] %vm236, %v234
        %s239 = sand.u32 %s109, 1
        %s240 = scalar_lea.sflag [#allocation3], %s239
        %s241 = sand.u32 %s109, 1
        %s242 = smul.addr %s241, 16
        %s243 = scalar_lea.vmem [#allocation2], %s242
        // Predicated region
        $region33: #{pointwise_conv1d.1} parent=31 // pred_check
          %p244 = pneg %p119
        $region34: #{pointwise_conv1d.1} parent=31 // pred_check_branch
          %246 = sbr.rel (%p244) target = $region36
        $region35: #{pointwise_conv1d.1} parent=31 // pred_region
          %248 = vsyncadd %s240, 0
          %s249 = smul.addr %s22, 2
          %s250 = sadd.s32 %s21, %s249
          %s251 = smul.addr %s250, 8
          %s252 = scalar_lea.hbm %s3, %s251
          %s253 = sshll.u32 %s243, 4
          %s254 = int_to_ptr.vmem [resolvable:$true] %s253
          %s255 = sshll.u32 %s252, 4
          %s256 = int_to_ptr.hbm [resolvable:$true] %s255
          %261 = dma.vmem_to_hbm [thread:$0]  %s254, 256, %s256, %s240, 128, 128, 8
        $region36: #{pointwise_conv1d.1} parent=31 // pred_fallthru
          _
      $region32: #{pointwise_conv1d.1} parent=5 // pred_fallthru
        _
      %p262 = scmp.le.s32.totalorder 2, %s12
      // Predicated region
      $region37: #{pointwise_conv1d.1} parent=5 // pred_check
        %p263 = pneg %p262
      $region38: #{pointwise_conv1d.1} parent=5 // pred_check_branch
        %265 = sbr.rel (%p263) target = $region40
      $region39: #{pointwise_conv1d.1} parent=5 // pred_region
        %s266 = ssub.s32 %s12, 2
        // Predicated region
        $region41: #{pointwise_conv1d.1} parent=39 // pred_check
          %p267 = pneg %p125
        $region42: #{pointwise_conv1d.1} parent=39 // pred_check_branch
          %269 = sbr.rel (%p267) target = $region44
        $region43: #{pointwise_conv1d.1} parent=39 // pred_region
          %s270 = sand.u32 %s110, 1
          %s271 = scalar_lea.sflag [#allocation3], %s270
          %s272 = sand.u32 %s110, 1
          %s273 = smul.addr %s272, 16
          %s274 = scalar_lea.vmem [#allocation2], %s273
          %276 = dma.done %s271, 256
        $region44: #{pointwise_conv1d.1} parent=39 // pred_fallthru
          _
      $region40: #{pointwise_conv1d.1} parent=5 // pred_fallthru
        _
    $region6: #{pointwise_conv1d.1} parent=1 // loop_footer
      %s16 = sadd.s32 1, %s12
    $region7: #{pointwise_conv1d.1} parent=1 // loop_footer_branch
      %11 = sbr.rel target = $region3
    $region8: #{pointwise_conv1d.1} parent=1 // loop_exit
      _
    %277 = vsyncpa [#allocation3], 1
    %s278 = scalar_lea.sflag [#allocation3], 1
    %279 = vsyncpa %s278, 1

</llo_original>
